<compile_context>
chip_gen: v7x
topology: tpu7x:2x2x1
jax: 0.10.0
libtpu: 0.0.40
codegen_flags: <defaults>
</compile_context>

<pallas_src>
import functools

import jax
import jax.numpy as jnp
from jax.experimental import pallas as pl
from jax.experimental.pallas import tpu as pltpu


def _round_up(x: int, m: int) -> int:
    return ((x + m - 1) // m) * m


def _chip_tuning():
    """Per-generation tuning: (input block_bytes, min parallel row blocks)."""
    try:
        kind = jax.devices()[0].device_kind.lower()
    except Exception:
        kind = ""
    if "v7" in kind:
        # v7x: ~3.2 TB/s HBM per TC -> bigger blocks amortize the ~0.35us
        # per-grid-step overhead; 2 TensorCores share the "parallel" axis.
        return 14 * 1024 * 1024, 2
    # v5e / v6e: 4 MiB blocks already keep per-step overhead <10% of DMA time.
    return 4 * 1024 * 1024, 1


def _pick_row_block(R: int, sub: int, min_parallel_blocks: int) -> int:
    """Sublane-packed row block <= 256 minimizing wasted (garbage) rows."""
    cap = 256
    hi = min(cap, _round_up(R, sub))
    candidates = range(sub, hi + 1, sub)
    # Every garbage row in the partial last row block is streamed across all of
    # S, so minimize round_up(R, c) - R; tie-break toward the largest block.
    row_blk = min(candidates, key=lambda c: (pl.cdiv(R, c) * c - R, -c))
    # v7x: guarantee >= min_parallel_blocks blocks on the "parallel" axis so
    # both TensorCores get work on this bandwidth-bound op.  (s_blk is derived
    # *after* row_blk, so the total grid-step count stays roughly constant.)
    if (min_parallel_blocks > 1 and R > sub
            and pl.cdiv(R, row_blk) < min_parallel_blocks):
        row_blk = max(sub, _round_up(pl.cdiv(R, min_parallel_blocks), sub))
    return row_blk


def _gap_kernel(x_ref, o_ref, acc_ref, *, s_total, s_blk, inv_s):
    """One (row_blk, s_blk) tile of the row-wise mean reduction.

    grid = (row_blocks, s_blocks); S is the reduction axis (last, "arbitrary").
    acc_ref: (row_blk, 1) f32 VMEM scratch, resident across the S axis.
    """
    s_id = pl.program_id(1)
    last_s = pl.num_programs(1) - 1

    @pl.when(s_id == 0)
    def _init():
        acc_ref[...] = jnp.zeros_like(acc_ref)

    # Interior S blocks are fully in-bounds: plain accumulate, no mask.
    @pl.when(s_id != last_s)
    def _accumulate_full():
        acc_ref[...] += jnp.sum(x_ref[...], axis=-1, keepdims=True,
                                dtype=jnp.float32)

    # Trailing S block may overhang S: zero the out-of-bounds lanes before
    # summing (their contents are undefined), then finalize: scale once by the
    # precomputed 1/S and store.  Rows beyond R (partial row block) are simply
    # not written back by the pipeline.
    @pl.when(s_id == last_s)
    def _accumulate_masked_and_finalize():
        x = x_ref[...]
        lane = jax.lax.broadcasted_iota(jnp.int32, x.shape, 1)
        valid = (s_id * s_blk + lane) < s_total
        x = jnp.where(valid, x, jnp.zeros_like(x))
        acc_ref[...] += jnp.sum(x, axis=-1, keepdims=True, dtype=jnp.float32)
        o_ref[...] = (acc_ref[...] * inv_s).astype(o_ref.dtype)


def adaptive_avg_pool3d_to_1(x, *, block_bytes=None):
    """Pallas equivalent of nn.AdaptiveAvgPool3d(1) on an NCDHW tensor."""
    N, C, D, H, W = x.shape
    S = D * H * W
    R = N * C
    xf = x.reshape(R, S)

    itemsize = jnp.dtype(x.dtype).itemsize
    chip_block_bytes, min_parallel = _chip_tuning()
    if block_bytes is None:
        block_bytes = chip_block_bytes

    # Sublane packing: 8 rows/vreg for 32-bit, 16 for bf16, 32 for int8/fp8.
    sub = max(8, 32 // itemsize)
    row_blk = _pick_row_block(R, sub, min_parallel)

    # S block: multiple of 128 lanes, sized so one input block is ~block_bytes
    # (the pipeline double-buffers it), but never larger than S rounded up.
    s_budget = max(128, (block_bytes // (row_blk * itemsize)) // 128 * 128)
    s_blk = min(s_budget, _round_up(S, 128))

    grid = (pl.cdiv(R, row_blk), pl.cdiv(S, s_blk))

    # Scoped VMEM: double-buffered input block + output block + scratch,
    # plus headroom.  Derived from block size so v7x-sized blocks still compile
    # and small shapes don't over-reserve.
    in_block_bytes = row_blk * s_blk * itemsize
    vmem_limit_bytes = 2 * in_block_bytes + 8 * 1024 * 1024

    out = pl.pallas_call(
        functools.partial(_gap_kernel, s_total=S, s_blk=s_blk, inv_s=1.0 / S),
        out_shape=jax.ShapeDtypeStruct((R, 1), x.dtype),
        grid_spec=pltpu.PrefetchScalarGridSpec(
            num_scalar_prefetch=0,
            grid=grid,
            in_specs=[pl.BlockSpec((row_blk, s_blk), lambda r, s: (r, s))],
            # Output block index is constant along S, so it stays resident and
            # is written back once per row block (store only in the finalize
            # branch) -> one narrow masked store per row block total.
            out_specs=pl.BlockSpec((row_blk, 1), lambda r, s: (r, 0)),
            scratch_shapes=[pltpu.VMEM((row_blk, 1), jnp.float32)],
        ),
        compiler_params=pltpu.CompilerParams(
            dimension_semantics=("parallel", "arbitrary"),
            vmem_limit_bytes=vmem_limit_bytes,
        ),
    )(xf)

    return out[:, 0].reshape(N, C, 1, 1, 1)


class BaseNetPallas:
    """JAX/Pallas mirror of BaseNet.

    BaseNet's forward() is abstract; the only concrete member with compute
    semantics is `avgpool` (AdaptiveAvgPool3d(1)), backed by the Pallas kernel.
    """

    def __init__(self, features_only: bool, num_classes: int, in_channels: int):
        self.features_only = features_only
        self.num_classes = num_classes
        self.in_channels = in_channels
        self.avgpool = adaptive_avg_pool3d_to_1

    def forward(self, x):
        # TODO(synk): forward() is @abstractmethod in the PyTorch BaseNet; only
        # the avgpool member has concrete semantics, exercised here.
        feats = x
        if self.features_only:
            return feats
        pooled = self.avgpool(feats)                 # (N, C, 1, 1, 1)
        return pooled.reshape(pooled.shape[0], -1)   # (N, C)

    def init_weights(self):
        # BaseNet.init_weights touches Conv3d / BatchNorm modules; BaseNet
        # itself owns none, so this is a no-op here.
        pass


if __name__ == "__main__":
    key = jax.random.PRNGKey(0)

    # Case 1: small, nicely divisible shapes (S multiple of 128).
    N, C, D, H, W = 2, 4, 8, 8, 8
    x = jax.random.normal(key, (N, C, D, H, W), dtype=jnp.float32)
    net = BaseNetPallas(features_only=False, num_classes=10, in_channels=C)
    out = jax.block_until_ready(net.forward(x))
    ref = jnp.mean(x, axis=(2, 3, 4))
    assert out.shape == (N, C), out.shape
    assert jnp.allclose(out, ref, atol=1e-5, rtol=1e-5), "mismatch (case 1)"

    # Case 2: ragged shapes (C not multiple of 8, S=315 not multiple of 128)
    # exercising the partial-block + in-kernel lane-mask path (no jnp.pad).
    N2, C2, D2, H2, W2 = 2, 3, 5, 7, 9
    x2 = jax.random.normal(jax.random.PRNGKey(0), (N2, C2, D2, H2, W2),
                           dtype=jnp.float32)
    net2 = BaseNetPallas(features_only=False, num_classes=10, in_channels=C2)
    out2 = jax.block_until_ready(net2.forward(x2))
    ref2 = jnp.mean(x2, axis=(2, 3, 4))
    assert out2.shape == (N2, C2), out2.shape
    assert jnp.allclose(out2, ref2, atol=1e-5, rtol=1e-5), "mismatch (case 2)"

    # Case 3: bf16 input (16-row sublane packing) with ragged R and S.
    N3, C3, D3, H3, W3 = 2, 5, 4, 6, 10
    x3 = jax.random.normal(jax.random.PRNGKey(0), (N3, C3, D3, H3, W3),
                           dtype=jnp.bfloat16)
    net3 = BaseNetPallas(features_only=False, num_classes=10, in_channels=C3)
    out3 = jax.block_until_ready(net3.forward(x3))
    ref3 = jnp.mean(x3.astype(jnp.float32), axis=(2, 3, 4))
    assert out3.shape == (N3, C3), out3.shape
    assert jnp.allclose(out3.astype(jnp.float32), ref3, atol=1e-2, rtol=1e-2), \
        "mismatch (case 3)"

    print("KERNEL_OK")
</pallas_src>

<mosaic_0001>
module attributes {stable_mosaic.version = 11 : i64} {
  func.func @_gap_kernel(%arg0: i32, %arg1: i32, %arg2: memref<8x512xf32, #tpu.memory_space<vmem>>, %arg3: memref<8x1xf32, #tpu.memory_space<vmem>>, %arg4: memref<8x1xf32, #tpu.memory_space<vmem>>) attributes {dimension_semantics = [#tpu.dimension_semantics<parallel>, #tpu.dimension_semantics<arbitrary>], iteration_bounds = array<i64: 1, 1>, scalar_prefetch = 0 : i64, scratch_operands = 1 : i64, tpu.core_type = #tpu.core_type<tc>, window_params = [{transform_indices = @transform_0, window_bounds = array<i64: 8, 512>}, {transform_indices = @transform_1, window_bounds = array<i64: 8, 1>}]} {
    %c0_i32 = arith.constant 0 : i32
    %0 = arith.cmpi eq, %arg1, %c0_i32 : i32
    %1 = arith.extui %0 : i1 to i32
    %c0_i32_0 = arith.constant 0 : i32
    %2 = arith.cmpi ne, %1, %c0_i32_0 : i32
    scf.if %2 {
      %cst = arith.constant 0.000000e+00 : f32
      %9 = vector.broadcast %cst : f32 to vector<8x1xf32>
      %c0 = arith.constant 0 : index
      %c0_5 = arith.constant 0 : index
      %10 = vector.load %arg4[%c0, %c0_5] : memref<8x1xf32, #tpu.memory_space<vmem>>, vector<8x1xf32>
      tpu.vector_store %arg4[%c0, %c0_5], %9 {strides = array<i32>} : memref<8x1xf32, #tpu.memory_space<vmem>>, vector<8x1xf32>,
    } else {
    }
    %c0_i32_1 = arith.constant 0 : i32
    %3 = arith.cmpi ne, %arg1, %c0_i32_1 : i32
    %4 = arith.extui %3 : i1 to i32
    %c0_i32_2 = arith.constant 0 : i32
    %5 = arith.cmpi ne, %4, %c0_i32_2 : i32
    scf.if %5 {
      %c0 = arith.constant 0 : index
      %c0_5 = arith.constant 0 : index
      %9 = vector.load %arg4[%c0, %c0_5] : memref<8x1xf32, #tpu.memory_space<vmem>>, vector<8x1xf32>
      %c0_6 = arith.constant 0 : index
      %c0_7 = arith.constant 0 : index
      %10 = vector.load %arg2[%c0_6, %c0_7] : memref<8x512xf32, #tpu.memory_space<vmem>>, vector<8x512xf32>
      %cst = arith.constant dense<0.000000e+00> : vector<8xf32>
      %11 = vector.multi_reduction <add>, %10, %cst [1] : vector<8x512xf32> to vector<8xf32>
      %12 = vector.shape_cast %11 : vector<8xf32> to vector<8x1xf32>
      %13 = arith.addf %9, %12 : vector<8x1xf32>
      %c0_8 = arith.constant 0 : index
      %c0_9 = arith.constant 0 : index
      %14 = vector.load %arg4[%c0_8, %c0_9] : memref<8x1xf32, #tpu.memory_space<vmem>>, vector<8x1xf32>
      tpu.vector_store %arg4[%c0_8, %c0_9], %13 {strides = array<i32>} : memref<8x1xf32, #tpu.memory_space<vmem>>, vector<8x1xf32>,
    } else {
    }
    %c0_i32_3 = arith.constant 0 : i32
    %6 = arith.cmpi eq, %arg1, %c0_i32_3 : i32
    %7 = arith.extui %6 : i1 to i32
    %c0_i32_4 = arith.constant 0 : i32
    %8 = arith.cmpi ne, %7, %c0_i32_4 : i32
    scf.if %8 {
      %c0 = arith.constant 0 : index
      %c0_5 = arith.constant 0 : index
      %9 = vector.load %arg2[%c0, %c0_5] : memref<8x512xf32, #tpu.memory_space<vmem>>, vector<8x512xf32>
      %10 = tpu.iota {dimensions = array<i32: 1>} : vector<8x512xi32>
      %c512_i32 = arith.constant 512 : i32
      %11 = arith.muli %arg1, %c512_i32 : i32
      %12 = vector.broadcast %11 : i32 to vector<8x512xi32>
      %13 = arith.addi %12, %10 : vector<8x512xi32>
      %c512_i32_6 = arith.constant 512 : i32
      %14 = vector.broadcast %c512_i32_6 : i32 to vector<8x512xi32>
      %15 = arith.cmpi slt, %13, %14 : vector<8x512xi32>
      %cst = arith.constant 0.000000e+00 : f32
      %16 = vector.broadcast %cst : f32 to vector<8x512xf32>
      %17 = arith.select %15, %9, %16 : vector<8x512xi1>, vector<8x512xf32>
      %c0_7 = arith.constant 0 : index
      %c0_8 = arith.constant 0 : index
      %18 = vector.load %arg4[%c0_7, %c0_8] : memref<8x1xf32, #tpu.memory_space<vmem>>, vector<8x1xf32>
      %cst_9 = arith.constant dense<0.000000e+00> : vector<8xf32>
      %19 = vector.multi_reduction <add>, %17, %cst_9 [1] : vector<8x512xf32> to vector<8xf32>
      %20 = vector.shape_cast %19 : vector<8xf32> to vector<8x1xf32>
      %21 = arith.addf %18, %20 : vector<8x1xf32>
      %c0_10 = arith.constant 0 : index
      %c0_11 = arith.constant 0 : index
      %22 = vector.load %arg4[%c0_10, %c0_11] : memref<8x1xf32, #tpu.memory_space<vmem>>, vector<8x1xf32>
      tpu.vector_store %arg4[%c0_10, %c0_11], %21 {strides = array<i32>} : memref<8x1xf32, #tpu.memory_space<vmem>>, vector<8x1xf32>,
      %c0_12 = arith.constant 0 : index
      %c0_13 = arith.constant 0 : index
      %23 = vector.load %arg4[%c0_12, %c0_13] : memref<8x1xf32, #tpu.memory_space<vmem>>, vector<8x1xf32>
      %cst_14 = arith.constant 0.001953125 : f32
      %24 = vector.broadcast %cst_14 : f32 to vector<8x1xf32>
      %25 = arith.mulf %23, %24 : vector<8x1xf32>
      %c0_15 = arith.constant 0 : index
      %c0_16 = arith.constant 0 : index
      %26 = vector.load %arg3[%c0_15, %c0_16] : memref<8x1xf32, #tpu.memory_space<vmem>>, vector<8x1xf32>
      tpu.vector_store %arg3[%c0_15, %c0_16], %25 {strides = array<i32>} : memref<8x1xf32, #tpu.memory_space<vmem>>, vector<8x1xf32>,
    } else {
    }
    return
  }
  func.func @transform_0(%arg0: i32, %arg1: i32) -> (i32, i32) {
    %c0_i32 = arith.constant 0 : i32
    return %arg0, %arg1 : i32, i32
  }
  func.func @transform_1(%arg0: i32, %arg1: i32) -> (i32, i32) {
    %c0_i32 = arith.constant 0 : i32
    %c0_i32_0 = arith.constant 0 : i32
    return %arg0, %c0_i32 : i32, i32
  }
}

</mosaic_0001>

<llo_original>
// kernel: tpu_custom_call.1
$region0: #{tpu_custom_call.1}
  #allocation0 [shape = 'u32[]', space=smem, size = 0x4, offset = 0x4, fixed_abs, tag = 'smem constant byte address 0x4 - core index']
  #allocation1 [shape = 'u32[144,128]{1,0:T(1,128)}', space=vmem, size = 0x12000, scoped, tag = 'internal scratch']
  #allocation2 [shape = 'f32[8,1]{1,0:T(8,128)}', space=vmem, size = 0x1000, scoped, tag = 'scratch operand']
  %s0 = inlined_call_operand.hbm [shape: f32[8,512], index: 0, kind: input, shape index: {}]
  %s1 = inlined_call_operand.vmem [shape: f32[8,1], index: 1, kind: output, shape index: {}]
  %s2 = sld [smem:[#allocation0]]
  $region30: #{tpu_custom_call.1} parent=0
    _
  %s4 = ssub.s32 1, %s2
  %s5 = scalar_select 0, %s4, %s2
  $region1: #{tpu_custom_call.1} parent=0
    #allocation3 [shape = 'u8[16384]{0}', space=vmem, size = 0x4000, scoped, tag = 'input window, operand 0, single buffered']
    #allocation4 [shape = 's32[1]{0}', space=sflag, size = 0x4, scoped, tag = 'scoped memory for tpu_custom_call.1']
    %6 = vsyncpa [#allocation4], 0
    // Predicated region
    $region2: #{tpu_custom_call.1} parent=1 // pred_check
      _
    $region3: #{tpu_custom_call.1} parent=1 // pred_check_branch
      %8 = sbr.rel (0) target = $region5
    $region4: #{tpu_custom_call.1} parent=1 // pred_region
      %s10 = ssub.s32 512, 512
      %11 = vsyncadd [#allocation4], %s10
      %s13 = sshll.u32 [#allocation3], 4
      %s14 = int_to_ptr.vmem [resolvable:$true] %s13
      %16 = dma.hbm_to_vmem [thread:$0]  %s0, 512, %s14, [#allocation4]
    $region5: #{tpu_custom_call.1} parent=1 // pred_fallthru
      _
    // Predicated region
    $region6: #{tpu_custom_call.1} parent=1 // pred_check
      _
    $region7: #{tpu_custom_call.1} parent=1 // pred_check_branch
      %18 = sbr.rel (0) target = $region9
    $region8: #{tpu_custom_call.1} parent=1 // pred_region
      %19 = dma.done [#allocation4], 512
    $region9: #{tpu_custom_call.1} parent=1 // pred_fallthru
      _
    %p20 = scmp.eq.s32.totalorder 0, 0
    // Predicated region
    $region10: #{tpu_custom_call.1} parent=1 // pred_check
      %p21 = pneg %p20
    $region11: #{tpu_custom_call.1} parent=1 // pred_check_branch
      %23 = sbr.rel (%p21) target = $region13
    $region12: #{tpu_custom_call.1} parent=1 // pred_region
      %vm24 = vcmask 7168
      %25 = vst.msk [vmem:[#allocation2] sm:$0xff] %vm24, 0.0
    $region13: #{tpu_custom_call.1} parent=1 // pred_fallthru
      _
    %p26 = scmp.ne.s32.totalorder 0, 0
    // Predicated region
    $region14: #{tpu_custom_call.1} parent=1 // pred_check
      %p27 = pneg %p26
    $region15: #{tpu_custom_call.1} parent=1 // pred_check_branch
      %29 = sbr.rel (%p27) target = $region17
    $region16: #{tpu_custom_call.1} parent=1 // pred_region
      %v30 = vld [vmem:[#allocation2] sm:$0xff]
      %v31 = vld [vmem:[#allocation3] sm:$0xff]
      %v32 = vld [vmem:[#allocation3 + $0x8] sm:$0xff]
      %v33 = vld [vmem:[#allocation3 + $0x10] sm:$0xff]
      %v34 = vld [vmem:[#allocation3 + $0x18] sm:$0xff]
      %v35 = vadd.f32 %v31, %v32
      %v36 = vadd.f32 %v35, %v33
      %v37 = vadd.f32 %v36, %v34
      %38 = vadd.xlane.f32.xlu0 %v37
      %v39 = vpop.xlane.xlu0 %38
      %v40 = vadd.f32 %v30, %v39
      %vm41 = vcmask 7168
      %42 = vst.msk [vmem:[#allocation2] sm:$0xff] %vm41, %v40
    $region17: #{tpu_custom_call.1} parent=1 // pred_fallthru
      _
    // Predicated region
    $region18: #{tpu_custom_call.1} parent=1 // pred_check
      %p43 = pneg %p20
    $region19: #{tpu_custom_call.1} parent=1 // pred_check_branch
      %45 = sbr.rel (%p43) target = $region21
    $region20: #{tpu_custom_call.1} parent=1 // pred_region
      %v46 = vld [vmem:[#allocation3] sm:$0xff]
      %v47 = vld [vmem:[#allocation3 + $0x8] sm:$0xff]
      %v48 = vld [vmem:[#allocation3 + $0x10] sm:$0xff]
      %v49 = vld [vmem:[#allocation3 + $0x18] sm:$0xff]
      %v50 = vlaneseq
      %v51 = vand.u32 %v50, 127
      %v52 = vadd.s32 %v51, 128
      %v53 = vadd.s32 %v51, 256
      %v54 = vadd.s32 %v51, 384
      %s55 = smul.u32 0, 512
      %v56 = vstv %s55
      %v57 = vadd.s32 %v56, %v51
      %v58 = vadd.s32 %v56, %v52
      %v59 = vadd.s32 %v56, %v53
      %v60 = vadd.s32 %v56, %v54
      %vm61 = vcmp.lt.s32.totalorder %v57, 512
      %vm62 = vcmp.lt.s32.totalorder %v58, 512
      %vm63 = vcmp.lt.s32.totalorder %v59, 512
      %vm64 = vcmp.lt.s32.totalorder %v60, 512
      %v65 = vsel %vm61, %v46, 0.0
      %v66 = vsel %vm62, %v47, 0.0
      %v67 = vsel %vm63, %v48, 0.0
      %v68 = vsel %vm64, %v49, 0.0
      %v69 = vld [vmem:[#allocation2] sm:$0xff]
      %v70 = vadd.f32 %v65, %v66
      %v71 = vadd.f32 %v70, %v67
      %v72 = vadd.f32 %v71, %v68
      %73 = vadd.xlane.f32.xlu0 %v72
      %v74 = vpop.xlane.xlu0 %73
      %v75 = vadd.f32 %v69, %v74
      %vm76 = vcmask 7168
      %77 = vst.msk [vmem:[#allocation2] sm:$0xff] %vm76, %v75
      %v78 = vld [vmem:[#allocation2] sm:$0xff]
      %v79 = vmul.f32 %v78, 0.001953125
      %80 = vst.msk [vmem:[%s1] sm:$0xff] %vm76, %v79
    $region21: #{tpu_custom_call.1} parent=1 // pred_fallthru
      _
    // Predicated region
    $region22: #{tpu_custom_call.1} parent=1 // pred_check
      _
    $region23: #{tpu_custom_call.1} parent=1 // pred_check_branch
      %82 = sbr.rel (0) target = $region25
    $region24: #{tpu_custom_call.1} parent=1 // pred_region
      _
    $region25: #{tpu_custom_call.1} parent=1 // pred_fallthru
      _
    // Predicated region
    $region26: #{tpu_custom_call.1} parent=1 // pred_check
      _
    $region27: #{tpu_custom_call.1} parent=1 // pred_check_branch
      %84 = sbr.rel (0) target = $region29
    $region28: #{tpu_custom_call.1} parent=1 // pred_region
      _
    $region29: #{tpu_custom_call.1} parent=1 // pred_fallthru
      _
    %85 = vsyncpa [#allocation4], 1

</llo_original>
